<compile_context>
chip_gen: v6e
topology: v6e:2x2x1
jax: 0.10.0
libtpu: 0.0.40
codegen_flags: <defaults>
</compile_context>

<pallas_src>
import functools
import math

import jax
import jax.numpy as jnp
from jax import lax
from jax.experimental import pallas as pl
from jax.experimental.pallas import tpu as pltpu


LANE = 128        # lane width / feature-dim padding
ROW_BLOCK = 512   # row tile (review: 512-1024 on v5e/v6e; fine on v7x at these sizes)
MAX_COL = 2048    # dst-axis tile of the adjacency kernel (caps VMEM on v7x)

_VMEM_LIMIT_CACHE = None
_BUFFERED1_OK = None


# ----------------------------------------------------------------------------
# small helpers
# ----------------------------------------------------------------------------
def _round_up(n, m):
    return ((n + m - 1) // m) * m


def _pad2d(x, rows, cols):
    r, c = x.shape
    if r == rows and c == cols:
        return x
    return jnp.pad(x, ((0, rows - r), (0, cols - c)))


def _row_weight(n, rows):
    return (jnp.arange(rows) < n).astype(jnp.float32)[:, None]


def _grid_pad(n_max):
    """Common padded row count R plus row/col tile sizes (both divide R)."""
    R = _round_up(max(int(n_max), 1), LANE)
    if R <= ROW_BLOCK:
        rb = R
    else:
        R = _round_up(R, ROW_BLOCK)
        rb = ROW_BLOCK
    if R <= MAX_COL:
        cb = R
    else:
        R = _round_up(R, MAX_COL)
        cb = MAX_COL
    return R, rb, cb


def _vmem_limit():
    # ~96 MiB on v5e/v6e (128 MiB physical), ~48 MiB on v7x (64 MiB physical).
    global _VMEM_LIMIT_CACHE
    if _VMEM_LIMIT_CACHE is None:
        cap = 64 * 1024 * 1024
        try:
            cap = int(getattr(pltpu.get_tpu_info(), "vmem_capacity_bytes", cap)) or cap
        except Exception:
            pass
        _VMEM_LIMIT_CACHE = int(min(100 * 1024 * 1024, (cap * 3) // 4))
    return _VMEM_LIMIT_CACHE


def _cparams(semantics):
    return pltpu.CompilerParams(dimension_semantics=tuple(semantics),
                                vmem_limit_bytes=_vmem_limit())


def _buffered1_mode():
    """pl.Buffered(1) for constant-index blocks (halves their VMEM); one-time
    probe so we fall back to default double-buffering if unsupported."""
    global _BUFFERED1_OK
    if _BUFFERED1_OK is None:
        try:
            def _k(x_ref, o_ref):
                o_ref[...] = x_ref[...] + 1.0
            f = pl.pallas_call(
                _k,
                out_shape=jax.ShapeDtypeStruct((8, LANE), jnp.float32),
                grid=(2,),
                in_specs=[pl.BlockSpec((8, LANE), lambda i: (0, 0),
                                       pipeline_mode=pl.Buffered(1))],
                out_specs=pl.BlockSpec((8, LANE), lambda i: (0, 0)),
            )
            jax.block_until_ready(f(jnp.zeros((8, LANE), jnp.float32)))
            _BUFFERED1_OK = True
        except Exception:
            _BUFFERED1_OK = False
    return pl.Buffered(1) if _BUFFERED1_OK else None


def _const_spec(shape):
    idx = lambda *_: (0,) * len(shape)
    mode = _buffered1_mode()
    if mode is None:
        return pl.BlockSpec(shape, idx)
    return pl.BlockSpec(shape, idx, pipeline_mode=mode)


def _pow_gamma(x, gamma):
    # integer gamma -> VPU multiplies; float gamma -> transcendental pow
    g = float(gamma)
    if g == int(g) and int(g) >= 1:
        y = x
        for _ in range(int(g) - 1):
            y = y * x
        return y
    return jnp.power(x, g)


# ----------------------------------------------------------------------------
# Kernels
# ----------------------------------------------------------------------------
def _feat_chain_sce_kernel(x_ref, m_ref, lw_ref, wt_ref, bt_ref, we_ref,
                           wd_ref, bd_ref, o_ref, *, gamma):
    # mask -> weight_T -> (encoder stand-in) -> enc2dec -> mask -> dec_head
    #      -> per-row SCE vs original x, accumulated into the resident out block.
    r = pl.program_id(1)

    @pl.when(r == 0)
    def _():
        o_ref[...] = jnp.zeros_like(o_ref)

    x = x_ref[...].astype(jnp.float32)          # bf16 stream -> f32 math
    keep = 1.0 - m_ref[...]                     # (rb, 1) f32; 1 for kept nodes
    mask_x = x * keep
    proj = jnp.dot(mask_x.astype(jnp.bfloat16), wt_ref[...],
                   preferred_element_type=jnp.float32) + bt_ref[...]
    hidden = jnp.dot(proj.astype(jnp.bfloat16), we_ref[...],
                     preferred_element_type=jnp.float32)
    hidden = hidden * keep                      # hidden_rep[mask_nodes] = 0.0
    dec = jnp.dot(hidden.astype(jnp.bfloat16), wd_ref[...],
                  preferred_element_type=jnp.float32) + bd_ref[...]

    xn = x * lax.rsqrt(jnp.sum(x * x, axis=-1, keepdims=True) + 1e-12)
    dn = dec * lax.rsqrt(jnp.sum(dec * dec, axis=-1, keepdims=True) + 1e-12)
    cos = jnp.sum(xn * dn, axis=-1, keepdims=True)
    loss = _pow_gamma(jnp.maximum(1.0 - cos, 0.0), gamma)
    o_ref[...] += jnp.sum(loss * lw_ref[...])


def _embed_kernel(x_ref, v_ref, wt_ref, bt_ref, we_ref, o_ref):
    # weight_T -> (encoder stand-in) -> enc2dec; zero padded rows; emit bf16.
    proj = jnp.dot(x_ref[...], wt_ref[...],
                   preferred_element_type=jnp.float32) + bt_ref[...]
    hidden = jnp.dot(proj.astype(jnp.bfloat16), we_ref[...],
                     preferred_element_type=jnp.float32)
    o_ref[...] = (hidden * v_ref[...]).astype(o_ref.dtype)


def _adj_sce_kernel(s_ref, d_ref, a_ref, w_ref, o_ref,
                    dot_acc, a2_acc, r2_acc, *, gamma):
    # recon tile = src_tile @ dst_tile.T, cosine terms accumulated over dst tiles.
    c = pl.program_id(1)

    @pl.when(c == 0)
    def _():
        dot_acc[...] = jnp.zeros_like(dot_acc)
        a2_acc[...] = jnp.zeros_like(a2_acc)
        r2_acc[...] = jnp.zeros_like(r2_acc)

    recon = lax.dot_general(s_ref[...], d_ref[...],
                            dimension_numbers=(((1,), (1,)), ((), ())),
                            preferred_element_type=jnp.float32)
    a = a_ref[...].astype(jnp.float32)
    dot_acc[...] += jnp.sum(a * recon, axis=-1, keepdims=True)
    a2_acc[...] += jnp.sum(a * a, axis=-1, keepdims=True)
    r2_acc[...] += jnp.sum(recon * recon, axis=-1, keepdims=True)

    @pl.when(c == pl.num_programs(1) - 1)
    def _():
        cos = dot_acc[...] * lax.rsqrt(a2_acc[...] + 1e-12) \
                           * lax.rsqrt(r2_acc[...] + 1e-12)
        loss = _pow_gamma(jnp.maximum(1.0 - cos, 0.0), gamma)
        o_ref[...] = jnp.zeros((1, LANE), jnp.float32) + jnp.sum(loss * w_ref[...])


def _degree_mse_kernel(h_ref, deg_ref, w_ref, w1_ref, b1_ref, w2_ref, b2_ref,
                       cm_ref, o_ref):
    # DegreeDecoder (fc1 -> relu -> fc2 -> sigmoid) fused with masked SSE.
    r = pl.program_id(0)

    @pl.when(r == 0)
    def _():
        o_ref[...] = jnp.zeros_like(o_ref)

    h = jnp.dot(h_ref[...], w1_ref[...],
                preferred_element_type=jnp.float32) + b1_ref[...]
    h = jnp.maximum(h, 0.0)
    y = jnp.dot(h.astype(jnp.bfloat16), w2_ref[...],
                preferred_element_type=jnp.float32) + b2_ref[...]
    p = jax.nn.sigmoid(y)
    d = (deg_ref[...] - p) * cm_ref[...] * w_ref[...]
    o_ref[...] += jnp.sum(d * d)


def _edge_mlp_kernel(a_ref, b_ref, w1t_ref, b1c_ref, w2c_ref, b2c_ref, o_ref):
    # MaskEdgeDecoder on transposed tiles: x = src*dst with edges in the lane dim,
    # so the (1, edge_tile) output is lane-dense with no in-kernel relayout.
    x = a_ref[...].astype(jnp.float32) * b_ref[...].astype(jnp.float32)   # (Hp, eb)
    h = jnp.dot(w1t_ref[...], x.astype(jnp.bfloat16),
                preferred_element_type=jnp.float32)
    h = jnp.maximum(h + b1c_ref[...], 0.0)                                # (hh, eb)
    y = jnp.sum(h * w2c_ref[...], axis=0, keepdims=True) + b2c_ref[...]   # (1, eb)
    o_ref[...] = jax.nn.sigmoid(y)


# ----------------------------------------------------------------------------
# Wrappers
# ----------------------------------------------------------------------------
def feat_chain_sce_batched(x_stack, mask_stack, lossw_stack,
                           wt_w, wt_b, we, dh_w, dh_b, gamma, rb):
    T, R, Dp = x_stack.shape
    Hp = we.shape[0]
    g_r = R // rb
    out = pl.pallas_call(
        functools.partial(_feat_chain_sce_kernel, gamma=gamma),
        out_shape=jax.ShapeDtypeStruct((T, 1, LANE), jnp.float32),
        grid=(T, g_r),
        in_specs=[
            pl.BlockSpec((pl.Squeezed(), rb, Dp), lambda t, r: (t, r, 0)),
            pl.BlockSpec((pl.Squeezed(), rb, 1),  lambda t, r: (t, r, 0)),
            pl.BlockSpec((pl.Squeezed(), rb, 1),  lambda t, r: (t, r, 0)),
            pl.BlockSpec((pl.Squeezed(), Dp, Hp), lambda t, r: (t, 0, 0)),
            pl.BlockSpec((pl.Squeezed(), 1, Hp),  lambda t, r: (t, 0, 0)),
            _const_spec((Hp, Hp)),
            pl.BlockSpec((pl.Squeezed(), Hp, Dp), lambda t, r: (t, 0, 0)),
            pl.BlockSpec((pl.Squeezed(), 1, Dp),  lambda t, r: (t, 0, 0)),
        ],
        out_specs=pl.BlockSpec((pl.Squeezed(), 1, LANE), lambda t, r: (t, 0, 0)),
        compiler_params=_cparams(("parallel", "arbitrary")),
    )(x_stack, mask_stack, lossw_stack, wt_w, wt_b, we, dh_w, dh_b)
    return jnp.sum(out[:, 0, 0])


def embed_batched(x_stack, valid_stack, wt_w, wt_b, we, rb):
    T, R, Dp = x_stack.shape
    Hp = we.shape[0]
    g_r = R // rb
    return pl.pallas_call(
        _embed_kernel,
        out_shape=jax.ShapeDtypeStruct((T, R, Hp), jnp.bfloat16),
        grid=(T, g_r),
        in_specs=[
            pl.BlockSpec((pl.Squeezed(), rb, Dp), lambda t, r: (t, r, 0)),
            pl.BlockSpec((pl.Squeezed(), rb, 1),  lambda t, r: (t, r, 0)),
            pl.BlockSpec((pl.Squeezed(), Dp, Hp), lambda t, r: (t, 0, 0)),
            pl.BlockSpec((pl.Squeezed(), 1, Hp),  lambda t, r: (t, 0, 0)),
            _const_spec((Hp, Hp)),
        ],
        out_specs=pl.BlockSpec((pl.Squeezed(), rb, Hp), lambda t, r: (t, r, 0)),
        compiler_params=_cparams(("parallel", "parallel")),
    )(x_stack, valid_stack, wt_w, wt_b, we)


def adj_recon_sce(embs, src_idx, dst_idx, adj, n_src, rb, cb, gamma):
    T, R, Hp = embs.shape
    g_r = R // rb
    g_c = R // cb
    adj_p = _pad2d(adj.astype(jnp.bfloat16), R, R)   # 0/1 exact in bf16
    rv = _row_weight(n_src, R)
    out = pl.pallas_call(
        functools.partial(_adj_sce_kernel, gamma=gamma),
        out_shape=jax.ShapeDtypeStruct((1, g_r * LANE), jnp.float32),
        grid=(g_r, g_c),
        in_specs=[
            pl.BlockSpec((pl.Squeezed(), rb, Hp), lambda r, c: (src_idx, r, 0)),
            pl.BlockSpec((pl.Squeezed(), cb, Hp), lambda r, c: (dst_idx, c, 0)),
            pl.BlockSpec((rb, cb), lambda r, c: (r, c)),
            pl.BlockSpec((rb, 1),  lambda r, c: (r, 0)),
        ],
        out_specs=pl.BlockSpec((1, LANE), lambda r, c: (0, r)),
        scratch_shapes=[
            pltpu.VMEM((rb, 1), jnp.float32),
            pltpu.VMEM((rb, 1), jnp.float32),
            pltpu.VMEM((rb, 1), jnp.float32),
        ],
        compiler_params=_cparams(("parallel", "arbitrary")),
    )(embs, embs, adj_p, rv)
    return jnp.sum(out.reshape(g_r, LANE)[:, 0])


def degree_mse(embs, target_idx, degrees, n_valid, n_types, p, rb):
    T, R, Hp = embs.shape
    g_r = R // rb
    hh = p["w1"].shape[1]
    deg_p = _pad2d(degrees.astype(jnp.float32), R, LANE)
    rv = _row_weight(n_valid, R)
    cmask = (jnp.arange(LANE) < n_types).astype(jnp.float32).reshape(1, LANE)
    out = pl.pallas_call(
        _degree_mse_kernel,
        out_shape=jax.ShapeDtypeStruct((1, LANE), jnp.float32),
        grid=(g_r,),
        in_specs=[
            pl.BlockSpec((pl.Squeezed(), rb, Hp), lambda r: (target_idx, r, 0)),
            pl.BlockSpec((rb, LANE), lambda r: (r, 0)),
            pl.BlockSpec((rb, 1), lambda r: (r, 0)),
            _const_spec((Hp, hh)),
            _const_spec((1, hh)),
            _const_spec((hh, LANE)),
            _const_spec((1, LANE)),
            _const_spec((1, LANE)),
        ],
        out_specs=pl.BlockSpec((1, LANE), lambda r: (0, 0)),
        compiler_params=_cparams(("arbitrary",)),
    )(embs, deg_p, rv, p["w1"], p["b1"], p["w2"], p["b2"], cmask)
    return out[0, 0] / (n_valid * n_types)


def edge_decoder(dst_embs, src_embs, edge_indices, p):
    # TODO(synk): the per-edge row gather stays in XLA (jnp.take on bf16 embeddings);
    # a scalar-prefetch DMA gather would hide it behind the MLP but is out of scope.
    src_idx, dst_idx = edge_indices
    a = jnp.take(src_embs, src_idx, axis=0)      # (E, Hp) bf16
    b = jnp.take(dst_embs, dst_idx, axis=0)
    e, hp = a.shape
    hh = p["w1t"].shape[0]
    e_pad = _round_up(max(e, 1), LANE)
    eb = min(ROW_BLOCK, e_pad)
    e_pad = _round_up(e_pad, eb)
    g = e_pad // eb
    a_t = _pad2d(a.T, hp, e_pad)                 # edges -> lane dim
    b_t = _pad2d(b.T, hp, e_pad)
    out = pl.pallas_call(
        _edge_mlp_kernel,
        out_shape=jax.ShapeDtypeStruct((1, e_pad), jnp.float32),
        grid=(g,),
        in_specs=[
            pl.BlockSpec((hp, eb), lambda i: (0, i)),
            pl.BlockSpec((hp, eb), lambda i: (0, i)),
            _const_spec((hh, hp)),
            _const_spec((hh, 1)),
            _const_spec((hh, 1)),
            _const_spec((1, 1)),
        ],
        out_specs=pl.BlockSpec((1, eb), lambda i: (0, i)),
        compiler_params=_cparams(("parallel",)),
    )(a_t, b_t, p["w1t"], p["b1c"], p["w2c"], p["b2c"])
    return out[0, :e].reshape(e, 1)


# ----------------------------------------------------------------------------
# Parameter initialization (PyTorch-nn.Linear-like uniform, padded, bf16 weights)
# ----------------------------------------------------------------------------
def _init_linear_wb(key, din, dout, din_p, dout_p, bias=True):
    k1, k2 = jax.random.split(key)
    bound = 1.0 / math.sqrt(din)
    w = jax.random.uniform(k1, (din, dout), jnp.float32, -bound, bound)
    out = {"w": _pad2d(w, din_p, dout_p).astype(jnp.bfloat16)}
    if bias:
        b = jax.random.uniform(k2, (1, dout), jnp.float32, -bound, bound)
        out["b"] = _pad2d(b, 1, dout_p)
    return out


def _init_degree_decoder(key, din, dout, din_p):
    hidden = max(din // 2, 1)
    hh = _round_up(hidden, LANE)
    k1, k2 = jax.random.split(key)
    fc1 = _init_linear_wb(k1, din, hidden, din_p, hh)
    fc2 = _init_linear_wb(k2, hidden, dout, hh, LANE)
    return {"w1": fc1["w"], "b1": fc1["b"], "w2": fc2["w"], "b2": fc2["b"]}


def _init_edge_decoder(key, din, din_p):
    # stored transposed so the edge-decoder kernel never needs a relayout
    hidden = max(din // 2, 1)
    hh = _round_up(hidden, LANE)
    k1, k2, k3, k4 = jax.random.split(key, 4)
    b1d = 1.0 / math.sqrt(din)
    b2d = 1.0 / math.sqrt(hidden)
    w1 = jax.random.uniform(k1, (din, hidden), jnp.float32, -b1d, b1d)
    b1 = jax.random.uniform(k2, (1, hidden), jnp.float32, -b1d, b1d)
    w2 = jax.random.uniform(k3, (hidden, 1), jnp.float32, -b2d, b2d)
    b2 = jax.random.uniform(k4, (1, 1), jnp.float32, -b2d, b2d)
    return {
        "w1t": _pad2d(w1.T, hh, din_p).astype(jnp.bfloat16),
        "b1c": _pad2d(b1.T, hh, 1),
        "w2c": _pad2d(w2, hh, 1),
        "b2c": b2,
    }


def init_hgarme_params(key, all_types, ntype_out_dim, hidden_dim):
    hp = _round_up(hidden_dim, LANE)
    dp_max = max(_round_up(ntype_out_dim[t], LANE) for t in all_types)
    T = len(all_types)
    keys = jax.random.split(key, 4 + 2 * T)
    wt_w, wt_b, dh_w, dh_b = [], [], [], []
    for i, t in enumerate(all_types):
        lin = _init_linear_wb(keys[4 + 2 * i], ntype_out_dim[t], hidden_dim, dp_max, hp)
        wt_w.append(lin["w"]); wt_b.append(lin["b"])
        # TODO(synk): stand-in for the HGraphSAGE decoder output head (hidden -> out_dim)
        lin = _init_linear_wb(keys[5 + 2 * i], hidden_dim, ntype_out_dim[t], hp, dp_max)
        dh_w.append(lin["w"]); dh_b.append(lin["b"])
    return {
        "dp_max": dp_max,
        "hp": hp,
        "weight_T_w": jnp.stack(wt_w), "weight_T_b": jnp.stack(wt_b),
        "dec_head_w": jnp.stack(dh_w), "dec_head_b": jnp.stack(dh_b),
        "enc2dec_w": _init_linear_wb(keys[0], hidden_dim, hidden_dim, hp, hp, bias=False)["w"],
        # defined in the reference module; not used on the shown forward paths
        "edge_recons_enc2dec_w": _init_linear_wb(keys[1], hidden_dim, hidden_dim, hp, hp, bias=False)["w"],
        "degree_decoder": _init_degree_decoder(keys[2], hidden_dim, T, hp),
        "edge_decoder": _init_edge_decoder(keys[3], hidden_dim, hp),
    }


# ----------------------------------------------------------------------------
# Embeddings (shared by edge / degree paths and the edge-decoder demo)
# ----------------------------------------------------------------------------
def _stack_features(params, feats, all_types, R):
    dp = params["dp_max"]
    xs, valids = [], []
    for t in all_types:
        x = feats[t]
        xs.append(_pad2d(x.astype(jnp.bfloat16), R, dp))
        valids.append(_row_weight(int(x.shape[0]), R))
    return jnp.stack(xs), jnp.stack(valids)


def compute_ntype_embeddings(params, feats, all_types):
    n_max = max(int(feats[t].shape[0]) for t in all_types)
    R, rb, cb = _grid_pad(n_max)
    x_stack, valid_stack = _stack_features(params, feats, all_types, R)
    embs = embed_batched(x_stack, valid_stack, params["weight_T_w"],
                         params["weight_T_b"], params["enc2dec_w"], rb)
    return embs, (R, rb, cb), x_stack


# ----------------------------------------------------------------------------
# HGARME forward (feat / edge / degree reconstruction losses)
# ----------------------------------------------------------------------------
def hgarme_forward(params, subg, mask_rate=0.3, gamma=3.0):
    all_types = subg["all_types"]
    T = len(all_types)
    tindex = {t: i for i, t in enumerate(all_types)}
    target = subg["target_type"]
    feats = subg["dst_feat"]          # ntype -> [N_t, out_dim_t]
    degrees = subg["in_degree"]       # ntype -> [N_t, len(all_types)]
    relations = subg["relations"]     # list of (src_ntype, rel, dst_ntype)
    adjs = subg["rel_adj"]            # rel -> [N_src, N_dst] dense 0/1
    perms = subg["perm"]              # ntype -> permutation of node indices

    curr_mask_rate = float(mask_rate)

    # embeddings (enc2dec(weight_T(feat)) stand-in), bf16, stacked over ntypes
    embs, (R, rb, cb), x_stack = compute_ntype_embeddings(params, feats, all_types)

    # ---------------- mask_attribute_reconstruction (one batched kernel) ----------------
    mask_list, lossw_list = [], []
    for t in all_types:
        n = int(feats[t].shape[0])
        num_mask = int(curr_mask_rate * n)
        mask_vec = jnp.zeros((n, 1), jnp.float32)
        if num_mask > 0:
            mask_vec = mask_vec.at[perms[t][:num_mask]].set(1.0)
            loss_vec = mask_vec / float(num_mask)
        else:
            loss_vec = jnp.ones((n, 1), jnp.float32) / float(max(n, 1))
        mask_list.append(_pad2d(mask_vec, R, 1))
        lossw_list.append(_pad2d(loss_vec, R, 1))
    mask_stack = jnp.stack(mask_list)
    lossw_stack = jnp.stack(lossw_list)

    feat_loss = feat_chain_sce_batched(
        x_stack, mask_stack, lossw_stack,
        params["weight_T_w"], params["weight_T_b"], params["enc2dec_w"],
        params["dec_head_w"], params["dec_head_b"], gamma, rb) / T

    # ---------------- mask_edge_reconstruction ----------------
    adj_loss = 0.0
    num_loss = 0
    for dst_ntype in all_types:
        use_rel = [r for r in relations if r[2] == dst_ntype]
        if not use_rel:
            continue
        total = 0.0
        rows = 0
        for (src_ntype, rel, _dst) in use_rel:
            n_src = int(feats[src_ntype].shape[0])
            total = total + adj_recon_sce(embs, tindex[src_ntype], tindex[dst_ntype],
                                          adjs[rel], n_src, rb, cb, gamma)
            rows += n_src
        adj_loss = adj_loss + total / float(rows)
        num_loss += 1
    adj_loss = adj_loss / max(num_loss, 1)

    # ---------------- mask_edge_degree_reconstruction (target type) ----------------
    n_t = int(feats[target].shape[0])
    degree_loss = degree_mse(embs, tindex[target], degrees[target], n_t, T,
                             params["degree_decoder"], rb)

    return curr_mask_rate, feat_loss, adj_loss, degree_loss


# ----------------------------------------------------------------------------
# main
# ----------------------------------------------------------------------------
if __name__ == "__main__":
    key = jax.random.PRNGKey(0)
    all_types = ("author", "paper")
    target_type = "author"
    ntype_out_dim = {"author": 24, "paper": 16}
    hidden_dim = 32
    num_nodes = {"author": 16, "paper": 24}
    relations = [("paper", "pa", "author")]

    k_param, k_a, k_p, k_adj, k_deg, k_perm_a, k_perm_p = jax.random.split(key, 7)
    params = init_hgarme_params(k_param, all_types, ntype_out_dim, hidden_dim)

    feats = {
        "author": jax.random.normal(k_a, (num_nodes["author"], ntype_out_dim["author"]), jnp.float32),
        "paper": jax.random.normal(k_p, (num_nodes["paper"], ntype_out_dim["paper"]), jnp.float32),
    }
    adj = (jax.random.uniform(k_adj, (num_nodes["paper"], num_nodes["author"])) < 0.3).astype(jnp.float32)
    degrees = {
        "author": jax.random.randint(k_deg, (num_nodes["author"], len(all_types)), 0, 5).astype(jnp.float32),
    }
    perms = {
        "author": jax.random.permutation(k_perm_a, num_nodes["author"]),
        "paper": jax.random.permutation(k_perm_p, num_nodes["paper"]),
    }

    subg = {
        "all_types": all_types,
        "target_type": target_type,
        "dst_feat": feats,
        "in_degree": degrees,
        "relations": relations,
        "rel_adj": {"pa": adj},
        "perm": perms,
    }

    out = hgarme_forward(params, subg, mask_rate=0.3, gamma=3.0)
    losses = jax.block_until_ready(tuple(jnp.asarray(v) for v in out[1:]))

    # exercise the MaskEdgeDecoder kernel as well (module defines it; forward path unreachable)
    tindex = {t: i for i, t in enumerate(all_types)}
    embs, _, _ = compute_ntype_embeddings(params, feats, all_types)
    emb_paper = embs[tindex["paper"]][: num_nodes["paper"]]
    emb_author = embs[tindex["author"]][: num_nodes["author"]]
    edge_idx = (jnp.array([0, 1, 2, 3]), jnp.array([3, 2, 1, 0]))
    edge_out = jax.block_until_ready(
        edge_decoder(emb_author, emb_paper, edge_idx, params["edge_decoder"]))

    assert all(bool(jnp.isfinite(v)) for v in losses) and bool(jnp.all(jnp.isfinite(edge_out)))
    print("KERNEL_OK")
</pallas_src>

<mosaic_0001>
module attributes {stable_mosaic.version = 11 : i64} {
  func.func @_k(%arg0: i32, %arg1: memref<8x128xf32, #tpu.memory_space<vmem>>, %arg2: memref<8x128xf32, #tpu.memory_space<vmem>>) attributes {dimension_semantics = [#tpu.dimension_semantics<arbitrary>], iteration_bounds = array<i64: 2>, scalar_prefetch = 0 : i64, scratch_operands = 0 : i64, tpu.core_type = #tpu.core_type<tc>, window_params = [{pipeline_mode = #tpu.pipeline_mode<synchronous>, transform_indices = @transform_0, window_bounds = array<i64: 8, 128>}, {pipeline_mode = #tpu.pipeline_mode<synchronous>, transform_indices = @transform_1, window_bounds = array<i64: 8, 128>}]} {
    %c0 = arith.constant 0 : index
    %c0_0 = arith.constant 0 : index
    %0 = vector.load %arg1[%c0, %c0_0] : memref<8x128xf32, #tpu.memory_space<vmem>>, vector<8x128xf32>
    %cst = arith.constant 1.000000e+00 : f32
    %1 = vector.broadcast %cst : f32 to vector<8x128xf32>
    %2 = arith.addf %0, %1 : vector<8x128xf32>
    %c0_1 = arith.constant 0 : index
    %c0_2 = arith.constant 0 : index
    %3 = vector.load %arg2[%c0_1, %c0_2] : memref<8x128xf32, #tpu.memory_space<vmem>>, vector<8x128xf32>
    tpu.vector_store %arg2[%c0_1, %c0_2], %2 {strides = array<i32>} : memref<8x128xf32, #tpu.memory_space<vmem>>, vector<8x128xf32>,
    return
  }
  func.func @transform_0(%arg0: i32) -> (i32, i32) {
    %c0_i32 = arith.constant 0 : i32
    %c0_i32_0 = arith.constant 0 : i32
    %c0_i32_1 = arith.constant 0 : i32
    return %c0_i32, %c0_i32_0 : i32, i32
  }
  func.func @transform_1(%arg0: i32) -> (i32, i32) {
    %c0_i32 = arith.constant 0 : i32
    %c0_i32_0 = arith.constant 0 : i32
    %c0_i32_1 = arith.constant 0 : i32
    return %c0_i32, %c0_i32_0 : i32, i32
  }
}

module attributes {stable_mosaic.version = 11 : i64} {
  func.func @_embed_kernel(%arg0: i32, %arg1: i32, %arg2: memref<1x128x128xbf16, #tpu.memory_space<vmem>>, %arg3: memref<1x128x1xf32, #tpu.memory_space<vmem>>, %arg4: memref<1x128x128xbf16, #tpu.memory_space<vmem>>, %arg5: memref<1x1x128xf32, #tpu.memory_space<vmem>>, %arg6: memref<128x128xbf16, #tpu.memory_space<vmem>>, %arg7: memref<1x128x128xbf16, #tpu.memory_space<vmem>>) attributes {dimension_semantics = [#tpu.dimension_semantics<parallel>, #tpu.dimension_semantics<parallel>], iteration_bounds = array<i64: 2, 1>, scalar_prefetch = 0 : i64, scratch_operands = 0 : i64, tpu.core_type = #tpu.core_type<tc>, window_params = [{transform_indices = @transform_0, window_bounds = array<i64: 1, 128, 128>}, {transform_indices = @transform_1, window_bounds = array<i64: 1, 128, 1>}, {transform_indices = @transform_2, window_bounds = array<i64: 1, 128, 128>}, {transform_indices = @transform_3, window_bounds = array<i64: 1, 1, 128>}, {pipeline_mode = #tpu.pipeline_mode<synchronous>, transform_indices = @transform_4, window_bounds = array<i64: 128, 128>}, {transform_indices = @transform_5, window_bounds = array<i64: 1, 128, 128>}]} {
    %c0 = arith.constant 0 : index
    %c0_0 = arith.constant 0 : index
    %c0_1 = arith.constant 0 : index
    %0 = vector.load %arg2[%c0, %c0_0, %c0_1] : memref<1x128x128xbf16, #tpu.memory_space<vmem>>, vector<1x128x128xbf16>
    %1 = vector.shape_cast %0 : vector<1x128x128xbf16> to vector<128x128xbf16>
    %c0_2 = arith.constant 0 : index
    %c0_3 = arith.constant 0 : index
    %c0_4 = arith.constant 0 : index
    %2 = vector.load %arg4[%c0_2, %c0_3, %c0_4] : memref<1x128x128xbf16, #tpu.memory_space<vmem>>, vector<1x128x128xbf16>
    %3 = vector.shape_cast %2 : vector<1x128x128xbf16> to vector<128x128xbf16>
    %cst = arith.constant dense<0.000000e+00> : vector<128x128xf32>
    %4 = tpu.matmul %1, %3, %cst {dimension_numbers = #tpu.dot_dimension_numbers<[1], [0], [0], [1], [0, 0, 1, 1], [], []>} : vector<128x128xbf16>, vector<128x128xbf16>, vector<128x128xf32> -> vector<128x128xf32>
    %c0_5 = arith.constant 0 : index
    %c0_6 = arith.constant 0 : index
    %c0_7 = arith.constant 0 : index
    %5 = vector.load %arg5[%c0_5, %c0_6, %c0_7] : memref<1x1x128xf32, #tpu.memory_space<vmem>>, vector<1x1x128xf32>
    %6 = vector.shape_cast %5 : vector<1x1x128xf32> to vector<1x128xf32>
    %7 = vector.broadcast %6 : vector<1x128xf32> to vector<128x128xf32>
    %8 = arith.addf %4, %7 : vector<128x128xf32>
    %9 = arith.truncf %8 : vector<128x128xf32> to vector<128x128xbf16>
    %c0_8 = arith.constant 0 : index
    %c0_9 = arith.constant 0 : index
    %10 = vector.load %arg6[%c0_8, %c0_9] : memref<128x128xbf16, #tpu.memory_space<vmem>>, vector<128x128xbf16>
    %cst_10 = arith.constant dense<0.000000e+00> : vector<128x128xf32>
    %11 = tpu.matmul %9, %10, %cst_10 {dimension_numbers = #tpu.dot_dimension_numbers<[1], [0], [0], [1], [0, 0, 1, 1], [], []>} : vector<128x128xbf16>, vector<128x128xbf16>, vector<128x128xf32> -> vector<128x128xf32>
    %c0_11 = arith.constant 0 : index
    %c0_12 = arith.constant 0 : index
    %c0_13 = arith.constant 0 : index
    %12 = vector.load %arg3[%c0_11, %c0_12, %c0_13] : memref<1x128x1xf32, #tpu.memory_space<vmem>>, vector<1x128x1xf32>
    %13 = vector.shape_cast %12 : vector<1x128x1xf32> to vector<128x1xf32>
    %14 = vector.broadcast %13 : vector<128x1xf32> to vector<128x128xf32>
    %15 = arith.mulf %11, %14 : vector<128x128xf32>
    %16 = arith.truncf %15 : vector<128x128xf32> to vector<128x128xbf16>
    %c0_14 = arith.constant 0 : index
    %c0_15 = arith.constant 0 : index
    %c0_16 = arith.constant 0 : index
    %17 = vector.load %arg7[%c0_14, %c0_15, %c0_16] : memref<1x128x128xbf16, #tpu.memory_space<vmem>>, vector<1x128x128xbf16>
    %18 = vector.shape_cast %17 : vector<1x128x128xbf16> to vector<128x128xbf16>
    %19 = vector.shape_cast %16 : vector<128x128xbf16> to vector<1x128x128xbf16>
    tpu.vector_store %arg7[%c0_14, %c0_15, %c0_16], %19 {strides = array<i32>} : memref<1x128x128xbf16, #tpu.memory_space<vmem>>, vector<1x128x128xbf16>,
    return
  }
  func.func @transform_0(%arg0: i32, %arg1: i32) -> (i32, i32, i32) {
    %c0_i32 = arith.constant 0 : i32
    %c0_i32_0 = arith.constant 0 : i32
    return %arg0, %arg1, %c0_i32 : i32, i32, i32
  }
  func.func @transform_1(%arg0: i32, %arg1: i32) -> (i32, i32, i32) {
    %c0_i32 = arith.constant 0 : i32
    %c0_i32_0 = arith.constant 0 : i32
    return %arg0, %arg1, %c0_i32 : i32, i32, i32
  }
  func.func @transform_2(%arg0: i32, %arg1: i32) -> (i32, i32, i32) {
    %c0_i32 = arith.constant 0 : i32
    %c0_i32_0 = arith.constant 0 : i32
    %c0_i32_1 = arith.constant 0 : i32
    return %arg0, %c0_i32, %c0_i32_0 : i32, i32, i32
  }
  func.func @transform_3(%arg0: i32, %arg1: i32) -> (i32, i32, i32) {
    %c0_i32 = arith.constant 0 : i32
    %c0_i32_0 = arith.constant 0 : i32
    %c0_i32_1 = arith.constant 0 : i32
    return %arg0, %c0_i32, %c0_i32_0 : i32, i32, i32
  }
  func.func @transform_4(%arg0: i32, %arg1: i32) -> (i32, i32) {
    %c0_i32 = arith.constant 0 : i32
    %c0_i32_0 = arith.constant 0 : i32
    %c0_i32_1 = arith.constant 0 : i32
    return %c0_i32, %c0_i32_0 : i32, i32
  }
  func.func @transform_5(%arg0: i32, %arg1: i32) -> (i32, i32, i32) {
    %c0_i32 = arith.constant 0 : i32
    %c0_i32_0 = arith.constant 0 : i32
    return %arg0, %arg1, %c0_i32 : i32, i32, i32
  }
}

</mosaic_0001>

<llo_original>
// kernel: tpu_custom_call.1
$region0: #{tpu_custom_call.1}
  #allocation0 [shape = 'u32[]', space=smem, size = 0x4, offset = 0x4, fixed_abs, tag = 'smem constant byte address 0x4 - core index']
  #allocation1 [shape = 'u32[144,128]{1,0:T(1,128)}', space=vmem, size = 0x12000, scoped, tag = 'internal scratch']
  %s0 = inlined_call_operand.hbm [shape: f32[8,128], index: 0, kind: input, shape index: {}]
  %s1 = inlined_call_operand.hbm [shape: f32[8,128], index: 1, kind: output, shape index: {}]
  %s2 = sld [smem:[#allocation0]]
  $region41: #{tpu_custom_call.1} parent=0
    _
  %s4 = ssub.s32 1, %s2
  %s5 = scalar_select 0, %s4, %s2
  $region1: #{tpu_custom_call.1} parent=0
    #allocation2 [shape = 'u8[4096]{0}', space=vmem, size = 0x1000, scoped, tag = 'input window, operand 0, single buffered']
    #allocation3 [shape = 's32[2]{0}', space=sflag, size = 0x8, scoped, tag = 'scoped memory for tpu_custom_call.1']
    #allocation4 [shape = 's32[2]{0}', space=sflag, size = 0x8, scoped, tag = 'scoped memory for tpu_custom_call.1']
    #allocation5 [shape = 'u8[4096]{0}', space=vmem, size = 0x1000, scoped, tag = 'output window, operand 0, single buffered']
    %6 = vsyncpa [#allocation3], 0
    %7 = vsyncpa [#allocation4], 0
    loop: start=0, step=1, limit=4
    $region2: #{tpu_custom_call.1} parent=1 // loop_pre_header
      _
    $region3: #{tpu_custom_call.1} parent=1 // loop_header
      %s9 = sphi 0, %s13
      %p10 = scmp.ge.s32.totalorder %s9, 4
      %s17 = sphi 0, %s17
      %s19 = sphi 0, %s17
      %s20 = sphi 0, %s19
      %s34 = sphi 0, %s20
      %s38 = sphi 0, %s38
      %s40 = sphi 0, %s38
      %s41 = sphi 0, %s40
      %s55 = sphi 0, %s41
    $region4: #{tpu_custom_call.1} parent=1 // loop_header_branch
      %12 = sbr.rel (%p10) target = $region8
    $region5: #{tpu_custom_call.1} parent=1 // loop_body
      %s14 = ssub.s32 %s9, 1
      %s15 = ssub.s32 %s9, 2
      %s16 = sadd.s32 %s9, 1
      %s18 = sadd.s32 %s17, 1
      %p21 = scmp.eq.s32.totalorder %s9, 1
      %p22 = scmp.ne.s32.totalorder %s17, %s19
      %p23 = scmp.eq.s32.totalorder %s9, 0
      %p24 = por %p22, %p23
      %p25 = scmp.ne.s32.totalorder %s17, %s19
      %p26 = scmp.eq.s32.totalorder %s14, 1
      %p27 = por %p25, %p26
      %p28 = scmp.ne.s32.totalorder %s19, %s20
      %p29 = scmp.eq.s32.totalorder %s14, 0
      %p30 = por %p28, %p29
      %p31 = scmp.ne.s32.totalorder %s19, %s20
      %p32 = scmp.eq.s32.totalorder %s15, 1
      %p33 = por %p31, %p32
      %p35 = scmp.ne.s32.totalorder %s20, %s34
      %p36 = scmp.eq.s32.totalorder %s15, 0
      %p37 = por %p35, %p36
      %s39 = sadd.s32 %s38, 1
      %p42 = scmp.eq.s32.totalorder %s9, 1
      %p43 = scmp.ne.s32.totalorder %s38, %s40
      %p44 = scmp.eq.s32.totalorder %s9, 0
      %p45 = por %p43, %p44
      %p46 = scmp.ne.s32.totalorder %s38, %s40
      %p47 = scmp.eq.s32.totalorder %s14, 1
      %p48 = por %p46, %p47
      %p49 = scmp.ne.s32.totalorder %s40, %s41
      %p50 = scmp.eq.s32.totalorder %s14, 0
      %p51 = por %p49, %p50
      %p52 = scmp.ne.s32.totalorder %s40, %s41
      %p53 = scmp.eq.s32.totalorder %s15, 1
      %p54 = por %p52, %p53
      %p56 = scmp.ne.s32.totalorder %s41, %s55
      %p57 = scmp.eq.s32.totalorder %s15, 0
      %p58 = por %p56, %p57
      %p59 = scmp.le.s32.totalorder 1, %s9
      %p60 = scmp.lt.s32.totalorder %s9, 3
      %p61 = pnand %p59, %p60
      %p62 = pneg %p61
      // Predicated region
      $region9: #{tpu_custom_call.1} parent=5 // pred_check
        _
      $region10: #{tpu_custom_call.1} parent=5 // pred_check_branch
        %64 = sbr.rel (%p61) target = $region12
      $region11: #{tpu_custom_call.1} parent=5 // pred_region
        %s65 = ssub.s32 %s9, 1
        // Predicated region
        $region13: #{tpu_custom_call.1} parent=11 // pred_check
          %p66 = pneg %p30
        $region14: #{tpu_custom_call.1} parent=11 // pred_check_branch
          %68 = sbr.rel (%p66) target = $region16
        $region15: #{tpu_custom_call.1} parent=11 // pred_region
          %s70 = ssub.s32 128, 128
          %71 = vsyncadd [#allocation3], %s70
          %s73 = sshll.u32 [#allocation2], 4
          %s74 = int_to_ptr.vmem [resolvable:$true] %s73
          %76 = dma.hbm_to_vmem [thread:$0]  %s0, 128, %s74, [#allocation3]
        $region16: #{tpu_custom_call.1} parent=11 // pred_fallthru
          _
      $region12: #{tpu_custom_call.1} parent=5 // pred_fallthru
        _
      %p77 = scmp.lt.s32.totalorder %s9, 2
      // Predicated region
      $region17: #{tpu_custom_call.1} parent=5 // pred_check
        %p78 = pneg %p77
      $region18: #{tpu_custom_call.1} parent=5 // pred_check_branch
        %80 = sbr.rel (%p78) target = $region20
      $region19: #{tpu_custom_call.1} parent=5 // pred_region
        _
      $region20: #{tpu_custom_call.1} parent=5 // pred_fallthru
        _
      %p81 = scmp.le.s32.totalorder 1, %s9
      %p82 = scmp.lt.s32.totalorder %s9, 3
      %p83 = pnand %p81, %p82
      %p84 = pneg %p83
      // Predicated region
      $region21: #{tpu_custom_call.1} parent=5 // pred_check
        _
      $region22: #{tpu_custom_call.1} parent=5 // pred_check_branch
        %86 = sbr.rel (%p83) target = $region24
      $region23: #{tpu_custom_call.1} parent=5 // pred_region
        %s87 = ssub.s32 %s9, 1
        // Predicated region
        $region25: #{tpu_custom_call.1} parent=23 // pred_check
          %p88 = pneg %p30
        $region26: #{tpu_custom_call.1} parent=23 // pred_check_branch
          %90 = sbr.rel (%p88) target = $region28
        $region27: #{tpu_custom_call.1} parent=23 // pred_region
          %91 = dma.done [#allocation3], 128
        $region28: #{tpu_custom_call.1} parent=23 // pred_fallthru
          _
        %p92 = pneg %p30
        %p93 = pneg %p27
        %p94 = pneg %p51
        %p95 = pneg %p48
        %v96 = vld [vmem:[#allocation2] sm:$0xff]
        %v97 = vadd.f32 %v96, 1.0
        %98 = vst [vmem:[#allocation5] sm:$0xff] %v97
        // Predicated region
        $region29: #{tpu_custom_call.1} parent=23 // pred_check
          %p99 = pneg %p48
        $region30: #{tpu_custom_call.1} parent=23 // pred_check_branch
          %101 = sbr.rel (%p99) target = $region32
        $region31: #{tpu_custom_call.1} parent=23 // pred_region
          %s103 = ssub.s32 128, 128
          %104 = vsyncadd [#allocation4], %s103
          %s106 = sshll.u32 [#allocation5], 4
          %s107 = int_to_ptr.vmem [resolvable:$true] %s106
          %109 = dma.vmem_to_hbm [thread:$0]  %s107, 128, %s1, [#allocation4]
        $region32: #{tpu_custom_call.1} parent=23 // pred_fallthru
          _
        // Predicated region
        $region33: #{tpu_custom_call.1} parent=23 // pred_check
          %p110 = pneg %p48
        $region34: #{tpu_custom_call.1} parent=23 // pred_check_branch
          %112 = sbr.rel (%p110) target = $region36
        $region35: #{tpu_custom_call.1} parent=23 // pred_region
          %113 = dma.done [#allocation4], 128
        $region36: #{tpu_custom_call.1} parent=23 // pred_fallthru
          _
      $region24: #{tpu_custom_call.1} parent=5 // pred_fallthru
        _
      %p114 = scmp.le.s32.totalorder 2, %s9
      // Predicated region
      $region37: #{tpu_custom_call.1} parent=5 // pred_check
        %p115 = pneg %p114
      $region38: #{tpu_custom_call.1} parent=5 // pred_check_branch
        %117 = sbr.rel (%p115) target = $region40
      $region39: #{tpu_custom_call.1} parent=5 // pred_region
        %s118 = ssub.s32 %s9, 2
      $region40: #{tpu_custom_call.1} parent=5 // pred_fallthru
        _
    $region6: #{tpu_custom_call.1} parent=1 // loop_footer
      %s13 = sadd.s32 1, %s9
    $region7: #{tpu_custom_call.1} parent=1 // loop_footer_branch
      %8 = sbr.rel target = $region3
    $region8: #{tpu_custom_call.1} parent=1 // loop_exit
      _
    %119 = vsyncpa [#allocation3], 1
    %s120 = scalar_lea.sflag [#allocation3], 1
    %121 = vsyncpa %s120, 1
    %122 = vsyncpa [#allocation4], 1
    %s123 = scalar_lea.sflag [#allocation4], 1
    %124 = vsyncpa %s123, 1

// kernel: tpu_custom_call.1
$region0: #{tpu_custom_call.1}
  #allocation0 [shape = 'u32[]', space=smem, size = 0x4, offset = 0x4, fixed_abs, tag = 'smem constant byte address 0x4 - core index']
  #allocation1 [shape = 'u32[144,128]{1,0:T(1,128)}', space=vmem, size = 0x12000, scoped, tag = 'internal scratch']
  %s0 = inlined_call_operand.vmem [shape: bf16[2,128,128], index: 0, kind: input, shape index: {}]
  %s1 = inlined_call_operand.vmem [shape: f32[2,128,1], index: 1, kind: input, shape index: {}]
  %s2 = inlined_call_operand.vmem [shape: bf16[2,128,128], index: 2, kind: input, shape index: {}]
  %s3 = inlined_call_operand.vmem [shape: f32[2,1,128], index: 3, kind: input, shape index: {}]
  %s4 = inlined_call_operand.hbm [shape: bf16[128,128], index: 4, kind: input, shape index: {}]
  %s5 = inlined_call_operand.hbm [shape: bf16[2,128,128], index: 5, kind: output, shape index: {}]
  %s6 = sld [smem:[#allocation0]]
  $region57: #{tpu_custom_call.1} parent=0
    _
  %s8 = ssub.s32 1, %s6
  %s9 = scalar_select 0, %s8, %s6
  $region1: #{tpu_custom_call.1} parent=0
    #allocation2 [shape = 'u8[32768]{0}', space=vmem, size = 0x8000, scoped, tag = 'input window, operand 4, single buffered']
    #allocation3 [shape = 's32[2]{0}', space=sflag, size = 0x8, scoped, tag = 'scoped memory for tpu_custom_call.1']
    #allocation4 [shape = 's32[2]{0}', space=sflag, size = 0x8, scoped, tag = 'scoped memory for tpu_custom_call.1']
    #allocation5 [shape = 'u8[65536]{0}', space=vmem, size = 0x10000, scoped, tag = 'output window, operand 0']
    %10 = vsyncpa [#allocation3], 0
    %11 = vsyncpa [#allocation4], 0
    %s12 = scalar_lea.sflag [#allocation4], 1
    %13 = vsyncpa %s12, 0
    loop: start=0, step=1, limit=4
    $region2: #{tpu_custom_call.1} parent=1 // loop_pre_header
      _
    $region3: #{tpu_custom_call.1} parent=1 // loop_header
      %s15 = sphi 0, %s19
      %p16 = scmp.ge.s32.totalorder %s15, 4
      %s22 = sphi 0, %s34
      %s23 = sphi 0, %s30
      %s24 = sphi 0, %s22
      %s25 = sphi 0, %s23
      %s26 = sphi 0, %s24
      %s27 = sphi 0, %s25
      %s39 = sphi 0, %s41
      %s42 = sphi 0, %s39
      %s43 = sphi 0, %s42
      %s59 = sphi 0, %s43
      %s67 = sphi 0, %s69
      %s70 = sphi 0, %s67
      %s71 = sphi 0, %s70
      %s87 = sphi 0, %s71
      %s93 = sphi 0, %s95
      %s96 = sphi 0, %s93
      %s97 = sphi 0, %s96
      %s113 = sphi 0, %s97
      %s119 = sphi 0, %s121
      %s122 = sphi 0, %s119
      %s123 = sphi 0, %s122
      %s139 = sphi 0, %s123
      %s143 = sphi 0, %s143
      %s145 = sphi 0, %s143
      %s146 = sphi 0, %s145
      %s160 = sphi 0, %s146
      %s168 = sphi 0, %s170
      %s171 = sphi 0, %s168
      %s172 = sphi 0, %s171
      %s188 = sphi 0, %s172
    $region4: #{tpu_custom_call.1} parent=1 // loop_header_branch
      %18 = sbr.rel (%p16) target = $region8
    $region5: #{tpu_custom_call.1} parent=1 // loop_body
      %s20 = ssub.s32 %s15, 1
      %s21 = ssub.s32 %s15, 2
      %s28 = sadd.s32 1, %s23
      %p29 = scmp.ge.s32.totalorder %s28, 1
      %s30 = scalar_select %p29, 0, %s28
      %s31 = sadd.s32 1, %s22
      %s32 = scalar_select %p29, %s31, %s22
      %p33 = scmp.ge.s32.totalorder %s32, 2
      %s34 = scalar_select %p33, 0, %s32
      %s35 = ssub.s32 %s22, %s34
      %s36 = ssub.s32 %s23, %s30
      %s37 = sor.u32 %s35, %s36
      %p38 = scmp.eq.s32.totalorder %s37, 0
      %s40 = sadd.s32 %s39, 1
      %s41 = scalar_select %p38, %s39, %s40
      %p44 = pneg %p38
      %p45 = scmp.eq.s32.totalorder %s15, 1
      %p46 = por %p44, %p45
      %p47 = scmp.ne.s32.totalorder %s39, %s42
      %p48 = scmp.eq.s32.totalorder %s15, 0
      %p49 = por %p47, %p48
      %p50 = scmp.ne.s32.totalorder %s39, %s42
      %p51 = scmp.eq.s32.totalorder %s20, 1
      %p52 = por %p50, %p51
      %p53 = scmp.ne.s32.totalorder %s42, %s43
      %p54 = scmp.eq.s32.totalorder %s20, 0
      %p55 = por %p53, %p54
      %p56 = scmp.ne.s32.totalorder %s42, %s43
      %p57 = scmp.eq.s32.totalorder %s21, 1
      %p58 = por %p56, %p57
      %p60 = scmp.ne.s32.totalorder %s43, %s59
      %p61 = scmp.eq.s32.totalorder %s21, 0
      %p62 = por %p60, %p61
      %s63 = ssub.s32 %s22, %s34
      %s64 = ssub.s32 %s23, %s30
      %s65 = sor.u32 %s63, %s64
      %p66 = scmp.eq.s32.totalorder %s65, 0
      %s68 = sadd.s32 %s67, 1
      %s69 = scalar_select %p66, %s67, %s68
      %p72 = pneg %p66
      %p73 = scmp.eq.s32.totalorder %s15, 1
      %p74 = por %p72, %p73
      %p75 = scmp.ne.s32.totalorder %s67, %s70
      %p76 = scmp.eq.s32.totalorder %s15, 0
      %p77 = por %p75, %p76
      %p78 = scmp.ne.s32.totalorder %s67, %s70
      %p79 = scmp.eq.s32.totalorder %s20, 1
      %p80 = por %p78, %p79
      %p81 = scmp.ne.s32.totalorder %s70, %s71
      %p82 = scmp.eq.s32.totalorder %s20, 0
      %p83 = por %p81, %p82
      %p84 = scmp.ne.s32.totalorder %s70, %s71
      %p85 = scmp.eq.s32.totalorder %s21, 1
      %p86 = por %p84, %p85
      %p88 = scmp.ne.s32.totalorder %s71, %s87
      %p89 = scmp.eq.s32.totalorder %s21, 0
      %p90 = por %p88, %p89
      %s91 = ssub.s32 %s22, %s34
      %p92 = scmp.eq.s32.totalorder %s91, 0
      %s94 = sadd.s32 %s93, 1
      %s95 = scalar_select %p92, %s93, %s94
      %p98 = pneg %p92
      %p99 = scmp.eq.s32.totalorder %s15, 1
      %p100 = por %p98, %p99
      %p101 = scmp.ne.s32.totalorder %s93, %s96
      %p102 = scmp.eq.s32.totalorder %s15, 0
      %p103 = por %p101, %p102
      %p104 = scmp.ne.s32.totalorder %s93, %s96
      %p105 = scmp.eq.s32.totalorder %s20, 1
      %p106 = por %p104, %p105
      %p107 = scmp.ne.s32.totalorder %s96, %s97
      %p108 = scmp.eq.s32.totalorder %s20, 0
      %p109 = por %p107, %p108
      %p110 = scmp.ne.s32.totalorder %s96, %s97
      %p111 = scmp.eq.s32.totalorder %s21, 1
      %p112 = por %p110, %p111
      %p114 = scmp.ne.s32.totalorder %s97, %s113
      %p115 = scmp.eq.s32.totalorder %s21, 0
      %p116 = por %p114, %p115
      %s117 = ssub.s32 %s22, %s34
      %p118 = scmp.eq.s32.totalorder %s117, 0
      %s120 = sadd.s32 %s119, 1
      %s121 = scalar_select %p118, %s119, %s120
      %p124 = pneg %p118
      %p125 = scmp.eq.s32.totalorder %s15, 1
      %p126 = por %p124, %p125
      %p127 = scmp.ne.s32.totalorder %s119, %s122
      %p128 = scmp.eq.s32.totalorder %s15, 0
      %p129 = por %p127, %p128
      %p130 = scmp.ne.s32.totalorder %s119, %s122
      %p131 = scmp.eq.s32.totalorder %s20, 1
      %p132 = por %p130, %p131
      %p133 = scmp.ne.s32.totalorder %s122, %s123
      %p134 = scmp.eq.s32.totalorder %s20, 0
      %p135 = por %p133, %p134
      %p136 = scmp.ne.s32.totalorder %s122, %s123
      %p137 = scmp.eq.s32.totalorder %s21, 1
      %p138 = por %p136, %p137
      %p140 = scmp.ne.s32.totalorder %s123, %s139
      %p141 = scmp.eq.s32.totalorder %s21, 0
      %p142 = por %p140, %p141
      %s144 = sadd.s32 %s143, 1
      %p147 = scmp.eq.s32.totalorder %s15, 1
      %p148 = scmp.ne.s32.totalorder %s143, %s145
      %p149 = scmp.eq.s32.totalorder %s15, 0
      %p150 = por %p148, %p149
      %p151 = scmp.ne.s32.totalorder %s143, %s145
      %p152 = scmp.eq.s32.totalorder %s20, 1
      %p153 = por %p151, %p152
      %p154 = scmp.ne.s32.totalorder %s145, %s146
      %p155 = scmp.eq.s32.totalorder %s20, 0
      %p156 = por %p154, %p155
      %p157 = scmp.ne.s32.totalorder %s145, %s146
      %p158 = scmp.eq.s32.totalorder %s21, 1
      %p159 = por %p157, %p158
      %p161 = scmp.ne.s32.totalorder %s146, %s160
      %p162 = scmp.eq.s32.totalorder %s21, 0
      %p163 = por %p161, %p162
      %s164 = ssub.s32 %s22, %s34
      %s165 = ssub.s32 %s23, %s30
      %s166 = sor.u32 %s164, %s165
      %p167 = scmp.eq.s32.totalorder %s166, 0
      %s169 = sadd.s32 %s168, 1
      %s170 = scalar_select %p167, %s168, %s169
      %p173 = pneg %p167
      %p174 = scmp.eq.s32.totalorder %s15, 1
      %p175 = por %p173, %p174
      %p176 = scmp.ne.s32.totalorder %s168, %s171
      %p177 = scmp.eq.s32.totalorder %s15, 0
      %p178 = por %p176, %p177
      %p179 = scmp.ne.s32.totalorder %s168, %s171
      %p180 = scmp.eq.s32.totalorder %s20, 1
      %p181 = por %p179, %p180
      %p182 = scmp.ne.s32.totalorder %s171, %s172
      %p183 = scmp.eq.s32.totalorder %s20, 0
      %p184 = por %p182, %p183
      %p185 = scmp.ne.s32.totalorder %s171, %s172
      %p186 = scmp.eq.s32.totalorder %s21, 1
      %p187 = por %p185, %p186
      %p189 = scmp.ne.s32.totalorder %s172, %s188
      %p190 = scmp.eq.s32.totalorder %s21, 0
      %p191 = por %p189, %p190
      %p192 = scmp.le.s32.totalorder 1, %s15
      %p193 = scmp.lt.s32.totalorder %s15, 3
      %p194 = pnand %p192, %p193
      %p195 = pneg %p194
      // Predicated region
      $region9: #{tpu_custom_call.1} parent=5 // pred_check
        _
      $region10: #{tpu_custom_call.1} parent=5 // pred_check_branch
        %197 = sbr.rel (%p194) target = $region12
      $region11: #{tpu_custom_call.1} parent=5 // pred_region
        %s198 = ssub.s32 %s15, 1
        // Predicated region
        $region13: #{tpu_custom_call.1} parent=11 // pred_check
          %p199 = pneg %p156
        $region14: #{tpu_custom_call.1} parent=11 // pred_check_branch
          %201 = sbr.rel (%p199) target = $region16
        $region15: #{tpu_custom_call.1} parent=11 // pred_region
          %s203 = ssub.s32 1024, 1024
          %204 = vsyncadd [#allocation3], %s203
          %s205 = sshll.u32 [#allocation2], 4
          %s206 = int_to_ptr.vmem [resolvable:$true] %s205
          %211 = dma.hbm_to_vmem [thread:$0]  %s4, 1024, %s206, [#allocation3], 64, 64, 4
        $region16: #{tpu_custom_call.1} parent=11 // pred_fallthru
          _
      $region12: #{tpu_custom_call.1} parent=5 // pred_fallthru
        _
      %p212 = scmp.lt.s32.totalorder %s15, 2
      // Predicated region
      $region17: #{tpu_custom_call.1} parent=5 // pred_check
        %p213 = pneg %p212
      $region18: #{tpu_custom_call.1} parent=5 // pred_check_branch
        %215 = sbr.rel (%p213) target = $region20
      $region19: #{tpu_custom_call.1} parent=5 // pred_region
        // Predicated region
        $region21: #{tpu_custom_call.1} parent=19 // pred_check
          %p216 = pneg %p49
        $region22: #{tpu_custom_call.1} parent=19 // pred_check_branch
          %218 = sbr.rel (%p216) target = $region24
        $region23: #{tpu_custom_call.1} parent=19 // pred_region
          %s219 = smul.u32 16, %s23
          %p220 = scmp.lt.s32.totalorder %s22, 1
          %s221 = scalar_select %p220, %s22, 1
          %p222 = scmp.lt.s32.totalorder %s219, 15
          %s223 = scalar_select %p222, %s219, 15
          %s224 = smul.addr %s221, 16
          %s225 = sadd.s32 %s223, %s224
          %s226 = smul.addr %s225, 4
          %s227 = scalar_lea.vmem %s0, %s226
          %s228 = smul.u32 16, %s23
        $region24: #{tpu_custom_call.1} parent=19 // pred_fallthru
          _
        // Predicated region
        $region25: #{tpu_custom_call.1} parent=19 // pred_check
          %p229 = pneg %p77
        $region26: #{tpu_custom_call.1} parent=19 // pred_check_branch
          %231 = sbr.rel (%p229) target = $region28
        $region27: #{tpu_custom_call.1} parent=19 // pred_region
          %s232 = smul.u32 16, %s23
          %p233 = scmp.lt.s32.totalorder %s22, 1
          %s234 = scalar_select %p233, %s22, 1
          %p235 = scmp.lt.s32.totalorder %s232, 15
          %s236 = scalar_select %p235, %s232, 15
          %s237 = smul.addr %s234, 16
          %s238 = sadd.s32 %s236, %s237
          %s239 = smul.addr %s238, 8
          %s240 = scalar_lea.vmem %s1, %s239
          %s241 = smul.u32 16, %s23
        $region28: #{tpu_custom_call.1} parent=19 // pred_fallthru
          _
        // Predicated region
        $region29: #{tpu_custom_call.1} parent=19 // pred_check
          %p242 = pneg %p103
        $region30: #{tpu_custom_call.1} parent=19 // pred_check_branch
          %244 = sbr.rel (%p242) target = $region32
        $region31: #{tpu_custom_call.1} parent=19 // pred_region
          %p245 = scmp.lt.s32.totalorder %s22, 1
          %s246 = scalar_select %p245, %s22, 1
          %s247 = smul.addr %s246, 16
          %s248 = smul.addr %s247, 4
          %s249 = scalar_lea.vmem %s2, %s248
        $region32: #{tpu_custom_call.1} parent=19 // pred_fallthru
          _
        // Predicated region
        $region33: #{tpu_custom_call.1} parent=19 // pred_check
          %p250 = pneg %p129
        $region34: #{tpu_custom_call.1} parent=19 // pred_check_branch
          %252 = sbr.rel (%p250) target = $region36
        $region35: #{tpu_custom_call.1} parent=19 // pred_region
          %p253 = scmp.lt.s32.totalorder %s22, 1
          %s254 = scalar_select %p253, %s22, 1
          %s255 = scalar_lea.vmem %s3, %s254
        $region36: #{tpu_custom_call.1} parent=19 // pred_fallthru
          _
      $region20: #{tpu_custom_call.1} parent=5 // pred_fallthru
        _
      %p256 = scmp.le.s32.totalorder 1, %s15
      %p257 = scmp.lt.s32.totalorder %s15, 3
      %p258 = pnand %p256, %p257
      %p259 = pneg %p258
      // Predicated region
      $region37: #{tpu_custom_call.1} parent=5 // pred_check
        _
      $region38: #{tpu_custom_call.1} parent=5 // pred_check_branch
        %261 = sbr.rel (%p258) target = $region40
      $region39: #{tpu_custom_call.1} parent=5 // pred_region
        %s262 = ssub.s32 %s15, 1
        // Predicated region
        $region41: #{tpu_custom_call.1} parent=39 // pred_check
          %p263 = pneg %p156
        $region42: #{tpu_custom_call.1} parent=39 // pred_check_branch
          %265 = sbr.rel (%p263) target = $region44
        $region43: #{tpu_custom_call.1} parent=39 // pred_region
          %266 = dma.done [#allocation3], 1024
        $region44: #{tpu_custom_call.1} parent=39 // pred_fallthru
          _
        %s267 = smul.u32 16, %s25
        %p268 = scmp.lt.s32.totalorder %s24, 1
        %s269 = scalar_select %p268, %s24, 1
        %p270 = scmp.lt.s32.totalorder %s267, 15
        %s271 = scalar_select %p270, %s267, 15
        %s272 = smul.addr %s269, 16
        %s273 = sadd.s32 %s271, %s272
        %s274 = smul.addr %s273, 4
        %s275 = scalar_lea.vmem %s0, %s274
        %p276 = pneg %p55
        %p277 = pneg %p52
        %s278 = smul.u32 16, %s25
        %p279 = scmp.lt.s32.totalorder %s24, 1
        %s280 = scalar_select %p279, %s24, 1
        %p281 = scmp.lt.s32.totalorder %s278, 15
        %s282 = scalar_select %p281, %s278, 15
        %s283 = smul.addr %s280, 16
        %s284 = sadd.s32 %s282, %s283
        %s285 = smul.addr %s284, 8
        %s286 = scalar_lea.vmem %s1, %s285
        %p287 = pneg %p83
        %p288 = pneg %p80
        %p289 = scmp.lt.s32.totalorder %s24, 1
        %s290 = scalar_select %p289, %s24, 1
        %s291 = smul.addr %s290, 16
        %s292 = smul.addr %s291, 4
        %s293 = scalar_lea.vmem %s2, %s292
        %p294 = pneg %p109
        %p295 = pneg %p106
        %p296 = scmp.lt.s32.totalorder %s24, 1
        %s297 = scalar_select %p296, %s24, 1
        %s298 = scalar_lea.vmem %s3, %s297
        %p299 = pneg %p135
        %p300 = pneg %p132
        %p301 = pneg %p156
        %p302 = pneg %p153
        %p303 = pneg %p184
        %p304 = pneg %p181
        %s305 = sand.u32 %s171, 1
        %s306 = scalar_lea.sflag [#allocation4], %s305
        %s307 = sand.u32 %s171, 1
        %s308 = smul.addr %s307, 64
        %s309 = scalar_lea.vmem [#allocation5], %s308
        %s310 = smul.u32 16, %s25
        %p311 = scmp.lt.s32.totalorder %s24, 1
        %s312 = scalar_select %p311, %s24, 1
        %p313 = scmp.lt.s32.totalorder %s310, 15
        %s314 = scalar_select %p313, %s310, 15
        %s315 = smul.addr %s312, 16
        %s316 = sadd.s32 %s314, %s315
        %s317 = smul.addr %s316, 4
        %s318 = scalar_lea.vmem %s0, %s317
        %s319 = smul.u32 16, %s25
        %s320 = smul.u32 16, %s25
        %p321 = scmp.lt.s32.totalorder %s24, 1
        %s322 = scalar_select %p321, %s24, 1
        %p323 = scmp.lt.s32.totalorder %s320, 15
        %s324 = scalar_select %p323, %s320, 15
        %s325 = smul.addr %s322, 16
        %s326 = sadd.s32 %s324, %s325
        %s327 = smul.addr %s326, 8
        %s328 = scalar_lea.vmem %s1, %s327
        %s329 = smul.u32 16, %s25
        %p330 = scmp.lt.s32.totalorder %s24, 1
        %s331 = scalar_select %p330, %s24, 1
        %s332 = smul.addr %s331, 16
        %s333 = smul.addr %s332, 4
        %s334 = scalar_lea.vmem %s2, %s333
        %p335 = scmp.lt.s32.totalorder %s24, 1
        %s336 = scalar_select %p335, %s24, 1
        %s337 = scalar_lea.vmem %s3, %s336
        %s338 = smul.u32 16, %s25
        %v340 = vld [vmem:[%s318] sm:$0xf]
        %v341 = vld [vmem:[%s318 + $0x4] sm:$0xf]
        %v342 = vld [vmem:[%s318 + $0x8] sm:$0xf]
        %v343 = vld [vmem:[%s318 + $0xc] sm:$0xf]
        %v344 = vld [vmem:[%s318 + $0x10] sm:$0xf]
        %v345 = vld [vmem:[%s318 + $0x14] sm:$0xf]
        %v346 = vld [vmem:[%s318 + $0x18] sm:$0xf]
        %v347 = vld [vmem:[%s318 + $0x1c] sm:$0xf]
        %v348 = vld [vmem:[%s318 + $0x20] sm:$0xf]
        %v349 = vld [vmem:[%s318 + $0x24] sm:$0xf]
        %v350 = vld [vmem:[%s318 + $0x28] sm:$0xf]
        %v351 = vld [vmem:[%s318 + $0x2c] sm:$0xf]
        %v352 = vld [vmem:[%s318 + $0x30] sm:$0xf]
        %v353 = vld [vmem:[%s318 + $0x34] sm:$0xf]
        %v354 = vld [vmem:[%s318 + $0x38] sm:$0xf]
        %v355 = vld [vmem:[%s318 + $0x3c] sm:$0xf]
        %v356 = vld [vmem:[%s334] sm:$0xf]
        %v357 = vld [vmem:[%s334 + $0x4] sm:$0xf]
        %v358 = vld [vmem:[%s334 + $0x8] sm:$0xf]
        %v359 = vld [vmem:[%s334 + $0xc] sm:$0xf]
        %v360 = vld [vmem:[%s334 + $0x10] sm:$0xf]
        %v361 = vld [vmem:[%s334 + $0x14] sm:$0xf]
        %v362 = vld [vmem:[%s334 + $0x18] sm:$0xf]
        %v363 = vld [vmem:[%s334 + $0x1c] sm:$0xf]
        %v364 = vld [vmem:[%s334 + $0x20] sm:$0xf]
        %v365 = vld [vmem:[%s334 + $0x24] sm:$0xf]
        %v366 = vld [vmem:[%s334 + $0x28] sm:$0xf]
        %v367 = vld [vmem:[%s334 + $0x2c] sm:$0xf]
        %v368 = vld [vmem:[%s334 + $0x30] sm:$0xf]
        %v369 = vld [vmem:[%s334 + $0x34] sm:$0xf]
        %v370 = vld [vmem:[%s334 + $0x38] sm:$0xf]
        %v371 = vld [vmem:[%s334 + $0x3c] sm:$0xf]
        %v372 = vld [vmem:[%s337] sm:$0x1]
        %v374 = vlaneseq
        %v375 = vshrl.u32 %v374, 7
        %v376 = vsub.s32 0, %v375
        %v377 = vrot.slane %v372, %v376
        %v395 = vunpack.c.l.b16 %v340
        %v396 = vunpack.c.l.b16 %v341
        %v397 = vunpack.c.l.b16 %v342
        %v398 = vunpack.c.l.b16 %v343
        %v399 = vunpack.c.l.b16 %v344
        %v400 = vunpack.c.l.b16 %v345
        %v401 = vunpack.c.l.b16 %v346
        %v402 = vunpack.c.l.b16 %v347
        %v403 = vunpack.c.l.b16 %v348
        %v404 = vunpack.c.l.b16 %v349
        %v405 = vunpack.c.l.b16 %v350
        %v406 = vunpack.c.l.b16 %v351
        %v407 = vunpack.c.l.b16 %v352
        %v408 = vunpack.c.l.b16 %v353
        %v409 = vunpack.c.l.b16 %v354
        %v410 = vunpack.c.l.b16 %v355
        %v411 = vpack.c.b16 %v396, %v395
        %v412 = vpack.c.b16 %v398, %v397
        %v413 = vpack.c.b16 %v400, %v399
        %v414 = vpack.c.b16 %v402, %v401
        %v415 = vpack.c.b16 %v404, %v403
        %v416 = vpack.c.b16 %v406, %v405
        %v417 = vpack.c.b16 %v408, %v407
        %v418 = vpack.c.b16 %v410, %v409
        %v443 = vunpack.c.l.b16 %v356
        %v444 = vunpack.c.l.b16 %v357
        %v445 = vunpack.c.l.b16 %v358
        %v446 = vunpack.c.l.b16 %v359
        %v447 = vunpack.c.l.b16 %v360
        %v448 = vunpack.c.l.b16 %v361
        %v449 = vunpack.c.l.b16 %v362
        %v450 = vunpack.c.l.b16 %v363
        %v451 = vunpack.c.l.b16 %v364
        %v452 = vunpack.c.l.b16 %v365
        %v453 = vunpack.c.l.b16 %v366
        %v454 = vunpack.c.l.b16 %v367
        %v455 = vunpack.c.l.b16 %v368
        %v456 = vunpack.c.l.b16 %v369
        %v457 = vunpack.c.l.b16 %v370
        %v458 = vunpack.c.l.b16 %v371
        %v459 = vpack.c.b16 %v444, %v443
        %v460 = vpack.c.b16 %v446, %v445
        %v461 = vpack.c.b16 %v448, %v447
        %v462 = vpack.c.b16 %v450, %v449
        %v463 = vpack.c.b16 %v452, %v451
        %v464 = vpack.c.b16 %v454, %v453
        %v465 = vpack.c.b16 %v456, %v455
        %v466 = vpack.c.b16 %v458, %v457
        %475 = vmatprep.subr.bf16.mxu0 0
        %476 = vmatpush1.bf16.msra.mxu0 %v466
        %477 = vmatprep.subr.bf16.mxu0 0
        %478 = vmatpush1.bf16.msra.mxu0 %v465
        %479 = vmatprep.subr.bf16.mxu0 0
        %480 = vmatpush1.bf16.msra.mxu0 %v464
        %481 = vmatprep.subr.bf16.mxu0 0
        %482 = vmatpush1.bf16.msra.mxu0 %v463
        %483 = vmatprep.subr.bf16.mxu0 0
        %484 = vmatpush1.bf16.msra.mxu0 %v462
        %485 = vmatprep.subr.bf16.mxu0 0
        %486 = vmatpush1.bf16.msra.mxu0 %v461
        %487 = vmatprep.subr.bf16.mxu0 0
        %488 = vmatpush1.bf16.msra.mxu0 %v460
        %489 = vmatprep.subr.bf16.mxu0 0
        %490 = vmatpush1.bf16.msra.mxu0 %v459
        %491 = vmatprep.subr.bf16.mxu0 0
        %492 = vmatpush2.bf16.msra.mxu0 0
        %493 = vmatprep.subr.bf16.mxu0 0
        %494 = vmatpush2.bf16.msra.mxu0 0
        %495 = vmatprep.subr.bf16.mxu0 0
        %496 = vmatpush2.bf16.msra.mxu0 0
        %497 = vmatprep.subr.bf16.mxu0 0
        %498 = vmatpush2.bf16.msra.mxu0 0
        %499 = vmatprep.subr.bf16.mxu0 0
        %500 = vmatpush2.bf16.msra.mxu0 0
        %501 = vmatprep.subr.bf16.mxu0 0
        %502 = vmatpush2.bf16.msra.mxu0 0
        %503 = vmatprep.subr.bf16.mxu0 0
        %504 = vmatpush2.bf16.msra.mxu0 0
        %505 = vmatprep.subr.bf16.mxu0 0
        %506 = vmatpush2.bf16.msra.mxu0 0
        %507 = vmatprep.mubr.bf16.mxu0 0
        %508 = vmatmul.mubr.bf16.gmra.mxu0 %v411
        %v509 = vpop.f32.mrf.mxu0
        %v510 = vadd.f32 %v377, %v509
        %v511 = vpop.f32.mrf.mxu0
        %v512 = vpop.f32.mrf.mxu0
        %v513 = vadd.f32 %v377, %v512
        %v514 = vpop.f32.mrf.mxu0
        %515 = vmatprep.mubr.bf16.mxu0 0
        %516 = vmatmul.mubr.bf16.gmra.mxu0 %v412
        %v517 = vpop.f32.mrf.mxu0
        %v518 = vadd.f32 %v377, %v517
        %v519 = vpop.f32.mrf.mxu0
        %v520 = vpop.f32.mrf.mxu0
        %v521 = vadd.f32 %v377, %v520
        %v522 = vpop.f32.mrf.mxu0
        %523 = vmatprep.mubr.bf16.mxu0 0
        %524 = vmatmul.mubr.bf16.gmra.mxu0 %v413
        %v525 = vpop.f32.mrf.mxu0
        %v526 = vadd.f32 %v377, %v525
        %v527 = vpop.f32.mrf.mxu0
        %v528 = vpop.f32.mrf.mxu0
        %v529 = vadd.f32 %v377, %v528
        %v530 = vpop.f32.mrf.mxu0
        %531 = vmatprep.mubr.bf16.mxu0 0
        %532 = vmatmul.mubr.bf16.gmra.mxu0 %v414
        %v533 = vpop.f32.mrf.mxu0
        %v534 = vadd.f32 %v377, %v533
        %v535 = vpop.f32.mrf.mxu0
        %v536 = vpop.f32.mrf.mxu0
        %v537 = vadd.f32 %v377, %v536
        %v538 = vpop.f32.mrf.mxu0
        %539 = vmatprep.mubr.bf16.mxu0 0
        %540 = vmatmul.mubr.bf16.gmra.mxu0 %v415
        %v541 = vpop.f32.mrf.mxu0
        %v542 = vadd.f32 %v377, %v541
        %v543 = vpop.f32.mrf.mxu0
        %v544 = vpop.f32.mrf.mxu0
        %v545 = vadd.f32 %v377, %v544
        %v546 = vpop.f32.mrf.mxu0
        %547 = vmatprep.mubr.bf16.mxu0 0
        %548 = vmatmul.mubr.bf16.gmra.mxu0 %v416
        %v549 = vpop.f32.mrf.mxu0
        %v550 = vadd.f32 %v377, %v549
        %v551 = vpop.f32.mrf.mxu0
        %v552 = vpop.f32.mrf.mxu0
        %v553 = vadd.f32 %v377, %v552
        %v554 = vpop.f32.mrf.mxu0
        %555 = vmatprep.mubr.bf16.mxu0 0
        %556 = vmatmul.mubr.bf16.gmra.mxu0 %v417
        %v557 = vpop.f32.mrf.mxu0
        %v558 = vadd.f32 %v377, %v557
        %v559 = vpop.f32.mrf.mxu0
        %v560 = vpop.f32.mrf.mxu0
        %v561 = vadd.f32 %v377, %v560
        %v562 = vpop.f32.mrf.mxu0
        %563 = vmatprep.mubr.bf16.mxu0 0
        %564 = vmatmul.mubr.bf16.gmra.mxu0 %v418
        %v565 = vpop.f32.mrf.mxu0
        %v566 = vadd.f32 %v377, %v565
        %v567 = vpop.f32.mrf.mxu0
        %v568 = vpop.f32.mrf.mxu0
        %v569 = vadd.f32 %v377, %v568
        %v570 = vpop.f32.mrf.mxu0
        %571 = vdwg.mxu0
        %v572 = vpack.c.bf16 %v513, %v510
        %v573 = vpack.c.bf16 %v521, %v518
        %v574 = vpack.c.bf16 %v529, %v526
        %v575 = vpack.c.bf16 %v537, %v534
        %v576 = vpack.c.bf16 %v545, %v542
        %v577 = vpack.c.bf16 %v553, %v550
        %v578 = vpack.c.bf16 %v561, %v558
        %v579 = vpack.c.bf16 %v569, %v566
        %v580 = vld [vmem:[#allocation2] sm:$0xf]
        %v581 = vld [vmem:[#allocation2 + $0x4] sm:$0xf]
        %v582 = vld [vmem:[#allocation2 + $0x8] sm:$0xf]
        %v583 = vld [vmem:[#allocation2 + $0xc] sm:$0xf]
        %v584 = vld [vmem:[#allocation2 + $0x10] sm:$0xf]
        %v585 = vld [vmem:[#allocation2 + $0x14] sm:$0xf]
        %v586 = vld [vmem:[#allocation2 + $0x18] sm:$0xf]
        %v587 = vld [vmem:[#allocation2 + $0x1c] sm:$0xf]
        %v588 = vld [vmem:[#allocation2 + $0x20] sm:$0xf]
        %v589 = vld [vmem:[#allocation2 + $0x24] sm:$0xf]
        %v590 = vld [vmem:[#allocation2 + $0x28] sm:$0xf]
        %v591 = vld [vmem:[#allocation2 + $0x2c] sm:$0xf]
        %v592 = vld [vmem:[#allocation2 + $0x30] sm:$0xf]
        %v593 = vld [vmem:[#allocation2 + $0x34] sm:$0xf]
        %v594 = vld [vmem:[#allocation2 + $0x38] sm:$0xf]
        %v595 = vld [vmem:[#allocation2 + $0x3c] sm:$0xf]
        %v612 = vunpack.c.l.b16 %v580
        %v613 = vunpack.c.l.b16 %v581
        %v614 = vunpack.c.l.b16 %v582
        %v615 = vunpack.c.l.b16 %v583
        %v616 = vunpack.c.l.b16 %v584
        %v617 = vunpack.c.l.b16 %v585
        %v618 = vunpack.c.l.b16 %v586
        %v619 = vunpack.c.l.b16 %v587
        %v620 = vunpack.c.l.b16 %v588
        %v621 = vunpack.c.l.b16 %v589
        %v622 = vunpack.c.l.b16 %v590
        %v623 = vunpack.c.l.b16 %v591
        %v624 = vunpack.c.l.b16 %v592
        %v625 = vunpack.c.l.b16 %v593
        %v626 = vunpack.c.l.b16 %v594
        %v627 = vunpack.c.l.b16 %v595
        %v628 = vpack.c.b16 %v613, %v612
        %v629 = vpack.c.b16 %v615, %v614
        %v630 = vpack.c.b16 %v617, %v616
        %v631 = vpack.c.b16 %v619, %v618
        %v632 = vpack.c.b16 %v621, %v620
        %v633 = vpack.c.b16 %v623, %v622
        %v634 = vpack.c.b16 %v625, %v624
        %v635 = vpack.c.b16 %v627, %v626
        %644 = vmatprep.subr.bf16.mxu0 0
        %645 = vmatpush1.bf16.msra.mxu0 %v635
        %646 = vmatprep.subr.bf16.mxu0 0
        %647 = vmatpush1.bf16.msra.mxu0 %v634
        %648 = vmatprep.subr.bf16.mxu0 0
        %649 = vmatpush1.bf16.msra.mxu0 %v633
        %650 = vmatprep.subr.bf16.mxu0 0
        %651 = vmatpush1.bf16.msra.mxu0 %v632
        %652 = vmatprep.subr.bf16.mxu0 0
        %653 = vmatpush1.bf16.msra.mxu0 %v631
        %654 = vmatprep.subr.bf16.mxu0 0
        %655 = vmatpush1.bf16.msra.mxu0 %v630
        %656 = vmatprep.subr.bf16.mxu0 0
        %657 = vmatpush1.bf16.msra.mxu0 %v629
        %658 = vmatprep.subr.bf16.mxu0 0
        %659 = vmatpush1.bf16.msra.mxu0 %v628
        %660 = vmatprep.subr.bf16.mxu0 0
        %661 = vmatpush2.bf16.msra.mxu0 0
        %662 = vmatprep.subr.bf16.mxu0 0
        %663 = vmatpush2.bf16.msra.mxu0 0
        %664 = vmatprep.subr.bf16.mxu0 0
        %665 = vmatpush2.bf16.msra.mxu0 0
        %666 = vmatprep.subr.bf16.mxu0 0
        %667 = vmatpush2.bf16.msra.mxu0 0
        %668 = vmatprep.subr.bf16.mxu0 0
        %669 = vmatpush2.bf16.msra.mxu0 0
        %670 = vmatprep.subr.bf16.mxu0 0
        %671 = vmatpush2.bf16.msra.mxu0 0
        %672 = vmatprep.subr.bf16.mxu0 0
        %673 = vmatpush2.bf16.msra.mxu0 0
        %674 = vmatprep.subr.bf16.mxu0 0
        %675 = vmatpush2.bf16.msra.mxu0 0
        %676 = vmatprep.mubr.bf16.mxu0 0
        %677 = vmatmul.mubr.bf16.gmra.mxu0 %v572
        %v678 = vpop.f32.mrf.mxu0
        %v679 = vadd.f32 0.0, %v678
        %v680 = vpop.f32.mrf.mxu0
        %v681 = vpop.f32.mrf.mxu0
        %v682 = vadd.f32 0.0, %v681
        %v683 = vpop.f32.mrf.mxu0
        %684 = vmatprep.mubr.bf16.mxu0 0
        %685 = vmatmul.mubr.bf16.gmra.mxu0 %v573
        %v686 = vpop.f32.mrf.mxu0
        %v687 = vadd.f32 0.0, %v686
        %v688 = vpop.f32.mrf.mxu0
        %v689 = vpop.f32.mrf.mxu0
        %v690 = vadd.f32 0.0, %v689
        %v691 = vpop.f32.mrf.mxu0
        %692 = vmatprep.mubr.bf16.mxu0 0
        %693 = vmatmul.mubr.bf16.gmra.mxu0 %v574
        %v694 = vpop.f32.mrf.mxu0
        %v695 = vadd.f32 0.0, %v694
        %v696 = vpop.f32.mrf.mxu0
        %v697 = vpop.f32.mrf.mxu0
        %v698 = vadd.f32 0.0, %v697
        %v699 = vpop.f32.mrf.mxu0
        %700 = vmatprep.mubr.bf16.mxu0 0
        %701 = vmatmul.mubr.bf16.gmra.mxu0 %v575
        %v702 = vpop.f32.mrf.mxu0
        %v703 = vadd.f32 0.0, %v702
        %v704 = vpop.f32.mrf.mxu0
        %v705 = vpop.f32.mrf.mxu0
        %v706 = vadd.f32 0.0, %v705
        %v707 = vpop.f32.mrf.mxu0
        %708 = vmatprep.mubr.bf16.mxu0 0
        %709 = vmatmul.mubr.bf16.gmra.mxu0 %v576
        %v710 = vpop.f32.mrf.mxu0
        %v711 = vadd.f32 0.0, %v710
        %v712 = vpop.f32.mrf.mxu0
        %v713 = vpop.f32.mrf.mxu0
        %v714 = vadd.f32 0.0, %v713
        %v715 = vpop.f32.mrf.mxu0
        %716 = vmatprep.mubr.bf16.mxu0 0
        %717 = vmatmul.mubr.bf16.gmra.mxu0 %v577
        %v718 = vpop.f32.mrf.mxu0
        %v719 = vadd.f32 0.0, %v718
        %v720 = vpop.f32.mrf.mxu0
        %v721 = vpop.f32.mrf.mxu0
        %v722 = vadd.f32 0.0, %v721
        %v723 = vpop.f32.mrf.mxu0
        %724 = vmatprep.mubr.bf16.mxu0 0
        %725 = vmatmul.mubr.bf16.gmra.mxu0 %v578
        %v726 = vpop.f32.mrf.mxu0
        %v727 = vadd.f32 0.0, %v726
        %v728 = vpop.f32.mrf.mxu0
        %v729 = vpop.f32.mrf.mxu0
        %v730 = vadd.f32 0.0, %v729
        %v731 = vpop.f32.mrf.mxu0
        %732 = vmatprep.mubr.bf16.mxu0 0
        %733 = vmatmul.mubr.bf16.gmra.mxu0 %v579
        %v734 = vpop.f32.mrf.mxu0
        %v735 = vadd.f32 0.0, %v734
        %v736 = vpop.f32.mrf.mxu0
        %v737 = vpop.f32.mrf.mxu0
        %v738 = vadd.f32 0.0, %v737
        %v739 = vpop.f32.mrf.mxu0
        %740 = vdwg.mxu0
        %v741 = vld [vmem:[%s328] sm:$0xff]
        %v742 = vld [vmem:[%s328 + $0x8] sm:$0xff]
        %v743 = vld [vmem:[%s328 + $0x10] sm:$0xff]
        %v744 = vld [vmem:[%s328 + $0x18] sm:$0xff]
        %v745 = vld [vmem:[%s328 + $0x20] sm:$0xff]
        %v746 = vld [vmem:[%s328 + $0x28] sm:$0xff]
        %v747 = vld [vmem:[%s328 + $0x30] sm:$0xff]
        %v748 = vld [vmem:[%s328 + $0x38] sm:$0xff]
        %v749 = vld [vmem:[%s328 + $0x40] sm:$0xff]
        %v750 = vld [vmem:[%s328 + $0x48] sm:$0xff]
        %v751 = vld [vmem:[%s328 + $0x50] sm:$0xff]
        %v752 = vld [vmem:[%s328 + $0x58] sm:$0xff]
        %v753 = vld [vmem:[%s328 + $0x60] sm:$0xff]
        %v754 = vld [vmem:[%s328 + $0x68] sm:$0xff]
        %v755 = vld [vmem:[%s328 + $0x70] sm:$0xff]
        %v756 = vld [vmem:[%s328 + $0x78] sm:$0xff]
        %758 = vset.pattern.permute.xlu0 0
        %759 = vperm.xlu0 %758, %v741
        %v760 = vpop.permute.xlu0 %759
        %763 = vset.pattern.permute.xlu0 0
        %764 = vperm.xlu0 %763, %v742
        %v765 = vpop.permute.xlu0 %764
        %768 = vset.pattern.permute.xlu0 0
        %769 = vperm.xlu0 %768, %v743
        %v770 = vpop.permute.xlu0 %769
        %773 = vset.pattern.permute.xlu0 0
        %774 = vperm.xlu0 %773, %v744
        %v775 = vpop.permute.xlu0 %774
        %778 = vset.pattern.permute.xlu0 0
        %779 = vperm.xlu0 %778, %v745
        %v780 = vpop.permute.xlu0 %779
        %783 = vset.pattern.permute.xlu0 0
        %784 = vperm.xlu0 %783, %v746
        %v785 = vpop.permute.xlu0 %784
        %788 = vset.pattern.permute.xlu0 0
        %789 = vperm.xlu0 %788, %v747
        %v790 = vpop.permute.xlu0 %789
        %793 = vset.pattern.permute.xlu0 0
        %794 = vperm.xlu0 %793, %v748
        %v795 = vpop.permute.xlu0 %794
        %798 = vset.pattern.permute.xlu0 0
        %799 = vperm.xlu0 %798, %v749
        %v800 = vpop.permute.xlu0 %799
        %803 = vset.pattern.permute.xlu0 0
        %804 = vperm.xlu0 %803, %v750
        %v805 = vpop.permute.xlu0 %804
        %808 = vset.pattern.permute.xlu0 0
        %809 = vperm.xlu0 %808, %v751
        %v810 = vpop.permute.xlu0 %809
        %813 = vset.pattern.permute.xlu0 0
        %814 = vperm.xlu0 %813, %v752
        %v815 = vpop.permute.xlu0 %814
        %818 = vset.pattern.permute.xlu0 0
        %819 = vperm.xlu0 %818, %v753
        %v820 = vpop.permute.xlu0 %819
        %823 = vset.pattern.permute.xlu0 0
        %824 = vperm.xlu0 %823, %v754
        %v825 = vpop.permute.xlu0 %824
        %828 = vset.pattern.permute.xlu0 0
        %829 = vperm.xlu0 %828, %v755
        %v830 = vpop.permute.xlu0 %829
        %833 = vset.pattern.permute.xlu0 0
        %834 = vperm.xlu0 %833, %v756
        %v835 = vpop.permute.xlu0 %834
        %v837 = vmul.f32 %v679, %v760
        %v838 = vmul.f32 %v682, %v765
        %v839 = vmul.f32 %v687, %v770
        %v840 = vmul.f32 %v690, %v775
        %v841 = vmul.f32 %v695, %v780
        %v842 = vmul.f32 %v698, %v785
        %v843 = vmul.f32 %v703, %v790
        %v844 = vmul.f32 %v706, %v795
        %v845 = vmul.f32 %v711, %v800
        %v846 = vmul.f32 %v714, %v805
        %v847 = vmul.f32 %v719, %v810
        %v848 = vmul.f32 %v722, %v815
        %v849 = vmul.f32 %v727, %v820
        %v850 = vmul.f32 %v730, %v825
        %v851 = vmul.f32 %v735, %v830
        %v852 = vmul.f32 %v738, %v835
        %v853 = vpack.c.bf16 %v838, %v837
        %v854 = vpack.c.bf16 %v840, %v839
        %v855 = vpack.c.bf16 %v842, %v841
        %v856 = vpack.c.bf16 %v844, %v843
        %v857 = vpack.c.bf16 %v846, %v845
        %v858 = vpack.c.bf16 %v848, %v847
        %v859 = vpack.c.bf16 %v850, %v849
        %v860 = vpack.c.bf16 %v852, %v851
        %v869 = vunpack.c.l.b16 %v853
        %v870 = vunpack.c.h.b16 %v853
        %v871 = vunpack.c.l.b16 %v854
        %v872 = vunpack.c.h.b16 %v854
        %v873 = vunpack.c.l.b16 %v855
        %v874 = vunpack.c.h.b16 %v855
        %v875 = vunpack.c.l.b16 %v856
        %v876 = vunpack.c.h.b16 %v856
        %v877 = vunpack.c.l.b16 %v857
        %v878 = vunpack.c.h.b16 %v857
        %v879 = vunpack.c.l.b16 %v858
        %v880 = vunpack.c.h.b16 %v858
        %v881 = vunpack.c.l.b16 %v859
        %v882 = vunpack.c.h.b16 %v859
        %v883 = vunpack.c.l.b16 %v860
        %v884 = vunpack.c.h.b16 %v860
        %v885 = vpack.c.b16 %v869, %v869
        %v886 = vpack.c.b16 %v870, %v870
        %v887 = vpack.c.b16 %v871, %v871
        %v888 = vpack.c.b16 %v872, %v872
        %v889 = vpack.c.b16 %v873, %v873
        %v890 = vpack.c.b16 %v874, %v874
        %v891 = vpack.c.b16 %v875, %v875
        %v892 = vpack.c.b16 %v876, %v876
        %v893 = vpack.c.b16 %v877, %v877
        %v894 = vpack.c.b16 %v878, %v878
        %v895 = vpack.c.b16 %v879, %v879
        %v896 = vpack.c.b16 %v880, %v880
        %v897 = vpack.c.b16 %v881, %v881
        %v898 = vpack.c.b16 %v882, %v882
        %v899 = vpack.c.b16 %v883, %v883
        %v900 = vpack.c.b16 %v884, %v884
        %917 = vst [vmem:[%s309] sm:$0xf] %v885
        %918 = vst [vmem:[%s309 + $0x4] sm:$0xf] %v886
        %919 = vst [vmem:[%s309 + $0x8] sm:$0xf] %v887
        %920 = vst [vmem:[%s309 + $0xc] sm:$0xf] %v888
        %921 = vst [vmem:[%s309 + $0x10] sm:$0xf] %v889
        %922 = vst [vmem:[%s309 + $0x14] sm:$0xf] %v890
        %923 = vst [vmem:[%s309 + $0x18] sm:$0xf] %v891
        %924 = vst [vmem:[%s309 + $0x1c] sm:$0xf] %v892
        %925 = vst [vmem:[%s309 + $0x20] sm:$0xf] %v893
        %926 = vst [vmem:[%s309 + $0x24] sm:$0xf] %v894
        %927 = vst [vmem:[%s309 + $0x28] sm:$0xf] %v895
        %928 = vst [vmem:[%s309 + $0x2c] sm:$0xf] %v896
        %929 = vst [vmem:[%s309 + $0x30] sm:$0xf] %v897
        %930 = vst [vmem:[%s309 + $0x34] sm:$0xf] %v898
        %931 = vst [vmem:[%s309 + $0x38] sm:$0xf] %v899
        %932 = vst [vmem:[%s309 + $0x3c] sm:$0xf] %v900
        %s933 = sand.u32 %s171, 1
        %s934 = scalar_lea.sflag [#allocation4], %s933
        %s935 = sand.u32 %s171, 1
        %s936 = smul.addr %s935, 64
        %s937 = scalar_lea.vmem [#allocation5], %s936
        // Predicated region
        $region45: #{tpu_custom_call.1} parent=39 // pred_check
          %p938 = pneg %p181
        $region46: #{tpu_custom_call.1} parent=39 // pred_check_branch
          %940 = sbr.rel (%p938) target = $region48
        $region47: #{tpu_custom_call.1} parent=39 // pred_region
          %s941 = smul.u32 16, %s25
          %s943 = ssub.s32 1024, 1024
          %944 = vsyncadd %s934, %s943
          %s945 = smul.addr %s24, 16
          %s946 = sadd.s32 %s941, %s945
          %s947 = smul.addr %s946, 64
          %s948 = scalar_lea.hbm %s5, %s947
          %s949 = sshll.u32 %s937, 4
          %s950 = int_to_ptr.vmem [resolvable:$true] %s949
          %955 = dma.vmem_to_hbm [thread:$0]  %s950, 1024, %s948, %s934, 64, 64, 4
        $region48: #{tpu_custom_call.1} parent=39 // pred_fallthru
          _
      $region40: #{tpu_custom_call.1} parent=5 // pred_fallthru
        _
      %p956 = scmp.le.s32.totalorder 2, %s15
      // Predicated region
      $region49: #{tpu_custom_call.1} parent=5 // pred_check
        %p957 = pneg %p956
      $region50: #{tpu_custom_call.1} parent=5 // pred_check_branch
        %959 = sbr.rel (%p957) target = $region52
      $region51: #{tpu_custom_call.1} parent=5 // pred_region
        %s960 = ssub.s32 %s15, 2
        // Predicated region
        $region53: #{tpu_custom_call.1} parent=51 // pred_check
          %p961 = pneg %p187
        $region54: #{tpu_custom_call.1} parent=51 // pred_check_branch
          %963 = sbr.rel (%p961) target = $region56
        $region55: #{tpu_custom_call.1} parent=51 // pred_region
          %s964 = sand.u32 %s172, 1
          %s965 = scalar_lea.sflag [#allocation4], %s964
          %s966 = sand.u32 %s172, 1
          %s967 = smul.addr %s966, 64
          %s968 = scalar_lea.vmem [#allocation5], %s967
          %969 = dma.done %s965, 1024
        $region56: #{tpu_custom_call.1} parent=51 // pred_fallthru
          _
      $region52: #{tpu_custom_call.1} parent=5 // pred_fallthru
        _
    $region6: #{tpu_custom_call.1} parent=1 // loop_footer
      %s19 = sadd.s32 1, %s15
    $region7: #{tpu_custom_call.1} parent=1 // loop_footer_branch
      %14 = sbr.rel target = $region3
    $region8: #{tpu_custom_call.1} parent=1 // loop_exit
      _
    %970 = vsyncpa [#allocation3], 1
    %s971 = scalar_lea.sflag [#allocation3], 1
    %972 = vsyncpa %s971, 1
    %973 = vsyncpa [#allocation4], 1
    %s974 = scalar_lea.sflag [#allocation4], 1
    %975 = vsyncpa %s974, 1

</llo_original>
